<compile_context>
chip_gen: v6e
topology: v6e:2x2x1
jax: 0.10.0
libtpu: 0.0.40
codegen_flags: <defaults>
</compile_context>

<pallas_src>
import functools

import jax
import jax.numpy as jnp
from jax.experimental import pallas as pl
from jax.experimental.pallas import tpu as pltpu


def _int_pow(x, n):
    """Exact x**n for small non-negative integer n via repeated multiplication (VPU only)."""
    result = None
    acc = x
    e = n
    while e > 0:
        if e & 1:
            result = acc if result is None else result * acc
        acc = acc * acc
        e >>= 1
    return result if result is not None else jnp.ones_like(x)


def _focal_loss_kernel(y_pred_ref, y_true_ref, w_p_ref, out_ref, *, gamma):
    # Compute in f32 regardless of the I/O dtype (v5e VPU/EUP have no native bf16).
    y_pred = y_pred_ref[...].astype(jnp.float32)    # (tb, tT)
    y_true = y_true_ref[...].astype(jnp.float32)    # (tb, tT)
    w_p = w_p_ref[...].astype(jnp.float32)          # (1,  tT) -> broadcasts over sublanes

    p = jax.nn.sigmoid(y_pred)
    one_m_p = 1.0 - p

    # Match PyTorch: log(p.clamp(min=1e-8)), log((1-p).clamp(min=1e-8)).
    log_p = jnp.log(jnp.maximum(p, 1e-8))
    log_1mp = jnp.log(jnp.maximum(one_m_p, 1e-8))

    g = float(gamma)
    if g.is_integer() and 0 <= int(g) <= 8:
        # Integer gamma: pure VPU, no extra EUP transcendentals, bit-exact pow.
        pow_1mp = _int_pow(one_m_p, int(g))
        pow_p = _int_pow(p, int(g))
    else:
        # Non-integer gamma: pow(x, g) = exp(g * log(x)); reuse the clamped logs
        # already computed for the loss (2 fewer EUP ops/elem than jnp.power).
        # Differs from jnp.power only where |logit| > ~18.4, where the affected
        # term is multiplied by ~0 — negligible.
        pow_1mp = jnp.exp(g * log_1mp)
        pow_p = jnp.exp(g * log_p)

    focal = (-w_p) * pow_1mp * y_true * log_p - pow_p * (1.0 - y_true) * log_1mp
    out_ref[...] = focal.astype(out_ref.dtype)


def _round_up(x, m):
    return (x + m - 1) // m * m


def _choose_tiles(B, T):
    """Pick (tb, tT) tiles: lane-dense, ~4 MiB f32 max, >=4 grid steps when possible."""
    # Lane tile: multiple of 128, capped at 2048 lanes.
    tT = min(_round_up(T, 128), 2048)

    # ~4 MiB f32 tiles: with 2 inputs + 1 output double-buffered that is ~24 MiB
    # of pipelined VMEM, within scoped-VMEM (with the explicit limit below).
    max_tile_elems = 1024 * 1024
    tb_cap = max(8, (max_tile_elems // tT) // 8 * 8)
    tb = min(_round_up(B, 8), tb_cap)

    def n_steps(tb_, tT_):
        return pl.cdiv(B, tb_) * pl.cdiv(T, tT_)

    # Guarantee >=4 grid steps (when the problem allows it) so both v7x
    # TensorCores get work under dimension_semantics="parallel".
    while n_steps(tb, tT) < 4 and tb > 8:
        tb = max(8, _round_up(tb // 2, 8))
    while n_steps(tb, tT) < 4 and tT > 128:
        tT = max(128, _round_up(tT // 2, 128))
    return tb, tT


def focal_loss(y_pred, y_true, pos_weight, gamma):
    """Elementwise binary focal loss. y_pred, y_true: [B, T]; pos_weight: [T]."""
    B, T = y_pred.shape
    assert y_true.shape == (B, T)
    assert pos_weight.shape == (T,)

    tb, tT = _choose_tiles(B, T)

    # No padding / slicing: cdiv grid with ragged tail tiles (masked stores).
    grid = (pl.cdiv(T, tT), pl.cdiv(B, tb))  # T (lane) axis outermost

    w_p2d = pos_weight.reshape(1, T)

    kernel = functools.partial(_focal_loss_kernel, gamma=float(gamma))

    # Explicit scoped-VMEM budget: ~6 double-buffered tiles (f32 upper bound)
    # plus margin; well under the 64 MiB physical VMEM of v7x and unlocks
    # 4 MiB tiles on v5e's 16 MiB default.
    tile_bytes = tb * tT * 4
    vmem_limit = min(6 * tile_bytes + (4 << 20), 56 << 20)

    out = pl.pallas_call(
        kernel,
        out_shape=jax.ShapeDtypeStruct((B, T), y_pred.dtype),
        grid_spec=pltpu.PrefetchScalarGridSpec(
            num_scalar_prefetch=0,
            grid=grid,
            in_specs=[
                pl.BlockSpec((tb, tT), lambda jt, ib: (ib, jt)),   # y_pred
                pl.BlockSpec((tb, tT), lambda jt, ib: (ib, jt)),   # y_true
                pl.BlockSpec((1, tT), lambda jt, ib: (0, jt)),     # pos_weight (row-broadcast,
                                                                   #  constant over inner loop)
            ],
            out_specs=pl.BlockSpec((tb, tT), lambda jt, ib: (ib, jt)),
        ),
        compiler_params=pltpu.CompilerParams(
            dimension_semantics=("parallel", "parallel"),
            vmem_limit_bytes=vmem_limit),
    )(y_pred, y_true, w_p2d)
    return out


def focal_loss_ref(y_pred, y_true, pos_weight, gamma):
    """Pure-JAX reference matching the PyTorch module."""
    p = jax.nn.sigmoid(y_pred)
    w_p = pos_weight[None, :]
    pos = -w_p * (1.0 - p) ** gamma * y_true * jnp.log(jnp.clip(p, 1e-8, None))
    neg = -(p ** gamma) * (1.0 - y_true) * jnp.log(jnp.clip(1.0 - p, 1e-8, None))
    return pos + neg


if __name__ == "__main__":
    # Small shapes that exercise the ragged tail tiles on both axes (10 % 8 != 0,
    # 200 % 128 != 0) and give a 2x2 grid.
    B, T = 10, 200

    key = jax.random.PRNGKey(0)
    k1, k2, k3 = jax.random.split(key, 3)

    y_pred = jax.random.normal(k1, (B, T), dtype=jnp.float32) * 3.0   # logits
    y_true = (jax.random.uniform(k2, (B, T)) > 0.5).astype(jnp.float32)
    # Deterministic synthetic pos_weight (the module's __init__ stores it as a tensor).
    pos_weight = 0.5 + jax.random.uniform(k3, (T,), dtype=jnp.float32) * 2.0

    # Integer gamma (fast VPU pow path).
    gamma = 2.0
    out = focal_loss(y_pred, y_true, pos_weight, gamma)
    jax.block_until_ready(out)
    ref = focal_loss_ref(y_pred, y_true, pos_weight, gamma)
    assert out.shape == (B, T)
    assert jnp.allclose(out, ref, rtol=1e-5, atol=1e-5), "mismatch vs reference (gamma=2.0)"

    # Non-integer gamma (exp(g * log) path reusing the clamped logs).
    gamma_f = 1.5
    out_f = focal_loss(y_pred, y_true, pos_weight, gamma_f)
    jax.block_until_ready(out_f)
    ref_f = focal_loss_ref(y_pred, y_true, pos_weight, gamma_f)
    assert jnp.allclose(out_f, ref_f, rtol=1e-5, atol=1e-5), "mismatch vs reference (gamma=1.5)"

    print("KERNEL_OK")
</pallas_src>

<mosaic_0001>
module attributes {stable_mosaic.version = 11 : i64} {
  func.func @_focal_loss_kernel(%arg0: i32, %arg1: i32, %arg2: memref<8x128xf32, #tpu.memory_space<vmem>>, %arg3: memref<8x128xf32, #tpu.memory_space<vmem>>, %arg4: memref<1x128xf32, #tpu.memory_space<vmem>>, %arg5: memref<8x128xf32, #tpu.memory_space<vmem>>) attributes {dimension_semantics = [#tpu.dimension_semantics<parallel>, #tpu.dimension_semantics<parallel>], iteration_bounds = array<i64: 2, 2>, scalar_prefetch = 0 : i64, scratch_operands = 0 : i64, tpu.core_type = #tpu.core_type<tc>, window_params = [{transform_indices = @transform_0, window_bounds = array<i64: 8, 128>}, {transform_indices = @transform_1, window_bounds = array<i64: 8, 128>}, {transform_indices = @transform_2, window_bounds = array<i64: 1, 128>}, {transform_indices = @transform_3, window_bounds = array<i64: 8, 128>}]} {
    %c0 = arith.constant 0 : index
    %c0_0 = arith.constant 0 : index
    %0 = vector.load %arg2[%c0, %c0_0] : memref<8x128xf32, #tpu.memory_space<vmem>>, vector<8x128xf32>
    %c0_1 = arith.constant 0 : index
    %c0_2 = arith.constant 0 : index
    %1 = vector.load %arg3[%c0_1, %c0_2] : memref<8x128xf32, #tpu.memory_space<vmem>>, vector<8x128xf32>
    %c0_3 = arith.constant 0 : index
    %c0_4 = arith.constant 0 : index
    %2 = vector.load %arg4[%c0_3, %c0_4] : memref<1x128xf32, #tpu.memory_space<vmem>>, vector<1x128xf32>
    %3 = arith.negf %0 : vector<8x128xf32>
    %4 = math.exp %3 : vector<8x128xf32>
    %cst = arith.constant 1.000000e+00 : f32
    %5 = vector.broadcast %cst : f32 to vector<8x128xf32>
    %6 = arith.addf %5, %4 : vector<8x128xf32>
    %7 = arith.divf %5, %6 : vector<8x128xf32>
    %cst_5 = arith.constant 1.000000e+00 : f32
    %8 = vector.broadcast %cst_5 : f32 to vector<8x128xf32>
    %9 = arith.subf %8, %7 : vector<8x128xf32>
    %cst_6 = arith.constant 9.99999993E-9 : f32
    %10 = vector.broadcast %cst_6 : f32 to vector<8x128xf32>
    %11 = arith.maximumf %7, %10 : vector<8x128xf32>
    %12 = math.log %11 : vector<8x128xf32>
    %cst_7 = arith.constant 9.99999993E-9 : f32
    %13 = vector.broadcast %cst_7 : f32 to vector<8x128xf32>
    %14 = arith.maximumf %9, %13 : vector<8x128xf32>
    %15 = math.log %14 : vector<8x128xf32>
    %16 = arith.mulf %9, %9 : vector<8x128xf32>
    %17 = arith.mulf %7, %7 : vector<8x128xf32>
    %cst_8 = arith.constant 0.000000e+00 : f32
    %18 = vector.broadcast %cst_8 : f32 to vector<1x128xf32>
    %19 = arith.subf %18, %2 : vector<1x128xf32>
    %20 = vector.broadcast %19 : vector<1x128xf32> to vector<8x128xf32>
    %21 = arith.mulf %20, %16 : vector<8x128xf32>
    %22 = arith.mulf %21, %1 : vector<8x128xf32>
    %23 = arith.mulf %22, %12 : vector<8x128xf32>
    %cst_9 = arith.constant 1.000000e+00 : f32
    %24 = vector.broadcast %cst_9 : f32 to vector<8x128xf32>
    %25 = arith.subf %24, %1 : vector<8x128xf32>
    %26 = arith.mulf %17, %25 : vector<8x128xf32>
    %27 = arith.mulf %26, %15 : vector<8x128xf32>
    %28 = arith.subf %23, %27 : vector<8x128xf32>
    %c0_10 = arith.constant 0 : index
    %c0_11 = arith.constant 0 : index
    %29 = vector.load %arg5[%c0_10, %c0_11] : memref<8x128xf32, #tpu.memory_space<vmem>>, vector<8x128xf32>
    tpu.vector_store %arg5[%c0_10, %c0_11], %28 {strides = array<i32>} : memref<8x128xf32, #tpu.memory_space<vmem>>, vector<8x128xf32>,
    return
  }
  func.func @transform_0(%arg0: i32, %arg1: i32) -> (i32, i32) {
    %c0_i32 = arith.constant 0 : i32
    return %arg1, %arg0 : i32, i32
  }
  func.func @transform_1(%arg0: i32, %arg1: i32) -> (i32, i32) {
    %c0_i32 = arith.constant 0 : i32
    return %arg1, %arg0 : i32, i32
  }
  func.func @transform_2(%arg0: i32, %arg1: i32) -> (i32, i32) {
    %c0_i32 = arith.constant 0 : i32
    %c0_i32_0 = arith.constant 0 : i32
    return %c0_i32, %arg0 : i32, i32
  }
  func.func @transform_3(%arg0: i32, %arg1: i32) -> (i32, i32) {
    %c0_i32 = arith.constant 0 : i32
    return %arg1, %arg0 : i32, i32
  }
}

</mosaic_0001>

<llo_original>
// kernel: tpu_custom_call.1
$region0: #{tpu_custom_call.1}
  #allocation0 [shape = 'u32[]', space=smem, size = 0x4, offset = 0x4, fixed_abs, tag = 'smem constant byte address 0x4 - core index']
  #allocation1 [shape = 'u32[144,128]{1,0:T(1,128)}', space=vmem, size = 0x12000, scoped, tag = 'internal scratch']
  %s0 = inlined_call_operand.hbm [shape: f32[10,200], index: 0, kind: input, shape index: {}]
  %s1 = inlined_call_operand.hbm [shape: f32[10,200], index: 1, kind: input, shape index: {}]
  %s2 = inlined_call_operand.vmem [shape: f32[1,200], index: 2, kind: input, shape index: {}]
  %s3 = inlined_call_operand.hbm [shape: f32[10,200], index: 3, kind: output, shape index: {}]
  %s4 = sld [smem:[#allocation0]]
  $region53: #{tpu_custom_call.1} parent=0
    _
  %s6 = ssub.s32 1, %s4
  %s7 = scalar_select 0, %s6, %s4
  $region1: #{tpu_custom_call.1} parent=0
    #allocation2 [shape = 'u8[8192]{0}', space=vmem, size = 0x2000, scoped, tag = 'input window, operand 0']
    #allocation3 [shape = 's32[2]{0}', space=sflag, size = 0x8, scoped, tag = 'scoped memory for tpu_custom_call.1']
    #allocation4 [shape = 's32[2]{0}', space=sflag, size = 0x8, scoped, tag = 'scoped memory for tpu_custom_call.1']
    #allocation5 [shape = 'u8[8192]{0}', space=vmem, size = 0x2000, scoped, tag = 'input window, operand 1']
    #allocation6 [shape = 's32[2]{0}', space=sflag, size = 0x8, scoped, tag = 'scoped memory for tpu_custom_call.1']
    #allocation7 [shape = 'u8[8192]{0}', space=vmem, size = 0x2000, scoped, tag = 'output window, operand 0']
    %8 = vsyncpa [#allocation3], 0
    %s9 = scalar_lea.sflag [#allocation3], 1
    %10 = vsyncpa %s9, 0
    %11 = vsyncpa [#allocation6], 0
    %s12 = scalar_lea.sflag [#allocation6], 1
    %13 = vsyncpa %s12, 0
    %14 = vsyncpa [#allocation4], 0
    %s15 = scalar_lea.sflag [#allocation4], 1
    %16 = vsyncpa %s15, 0
    loop: start=0, step=1, limit=6
    $region2: #{tpu_custom_call.1} parent=1 // loop_pre_header
      _
    $region3: #{tpu_custom_call.1} parent=1 // loop_header
      %s18 = sphi 0, %s22
      %p19 = scmp.ge.s32.totalorder %s18, 6
      %s25 = sphi 0, %s37
      %s26 = sphi 0, %s33
      %s27 = sphi 0, %s25
      %s28 = sphi 0, %s26
      %s29 = sphi 0, %s27
      %s30 = sphi 0, %s28
      %s42 = sphi 0, %s44
      %s45 = sphi 0, %s42
      %s46 = sphi 0, %s45
      %s62 = sphi 0, %s46
      %s70 = sphi 0, %s72
      %s73 = sphi 0, %s70
      %s74 = sphi 0, %s73
      %s90 = sphi 0, %s74
      %s96 = sphi 0, %s98
      %s99 = sphi 0, %s96
      %s100 = sphi 0, %s99
      %s116 = sphi 0, %s100
      %s124 = sphi 0, %s126
      %s127 = sphi 0, %s124
      %s128 = sphi 0, %s127
      %s144 = sphi 0, %s128
    $region4: #{tpu_custom_call.1} parent=1 // loop_header_branch
      %21 = sbr.rel (%p19) target = $region8
    $region5: #{tpu_custom_call.1} parent=1 // loop_body
      %s23 = ssub.s32 %s18, 1
      %s24 = ssub.s32 %s18, 2
      %s31 = sadd.s32 1, %s26
      %p32 = scmp.ge.s32.totalorder %s31, 2
      %s33 = scalar_select %p32, 0, %s31
      %s34 = sadd.s32 1, %s25
      %s35 = scalar_select %p32, %s34, %s25
      %p36 = scmp.ge.s32.totalorder %s35, 2
      %s37 = scalar_select %p36, 0, %s35
      %s38 = ssub.s32 %s26, %s33
      %s39 = ssub.s32 %s25, %s37
      %s40 = sor.u32 %s38, %s39
      %p41 = scmp.eq.s32.totalorder %s40, 0
      %s43 = sadd.s32 %s42, 1
      %s44 = scalar_select %p41, %s42, %s43
      %p47 = pneg %p41
      %p48 = scmp.eq.s32.totalorder %s18, 3
      %p49 = por %p47, %p48
      %p50 = scmp.ne.s32.totalorder %s42, %s45
      %p51 = scmp.eq.s32.totalorder %s18, 0
      %p52 = por %p50, %p51
      %p53 = scmp.ne.s32.totalorder %s42, %s45
      %p54 = scmp.eq.s32.totalorder %s23, 3
      %p55 = por %p53, %p54
      %p56 = scmp.ne.s32.totalorder %s45, %s46
      %p57 = scmp.eq.s32.totalorder %s23, 0
      %p58 = por %p56, %p57
      %p59 = scmp.ne.s32.totalorder %s45, %s46
      %p60 = scmp.eq.s32.totalorder %s24, 3
      %p61 = por %p59, %p60
      %p63 = scmp.ne.s32.totalorder %s46, %s62
      %p64 = scmp.eq.s32.totalorder %s24, 0
      %p65 = por %p63, %p64
      %s66 = ssub.s32 %s26, %s33
      %s67 = ssub.s32 %s25, %s37
      %s68 = sor.u32 %s66, %s67
      %p69 = scmp.eq.s32.totalorder %s68, 0
      %s71 = sadd.s32 %s70, 1
      %s72 = scalar_select %p69, %s70, %s71
      %p75 = pneg %p69
      %p76 = scmp.eq.s32.totalorder %s18, 3
      %p77 = por %p75, %p76
      %p78 = scmp.ne.s32.totalorder %s70, %s73
      %p79 = scmp.eq.s32.totalorder %s18, 0
      %p80 = por %p78, %p79
      %p81 = scmp.ne.s32.totalorder %s70, %s73
      %p82 = scmp.eq.s32.totalorder %s23, 3
      %p83 = por %p81, %p82
      %p84 = scmp.ne.s32.totalorder %s73, %s74
      %p85 = scmp.eq.s32.totalorder %s23, 0
      %p86 = por %p84, %p85
      %p87 = scmp.ne.s32.totalorder %s73, %s74
      %p88 = scmp.eq.s32.totalorder %s24, 3
      %p89 = por %p87, %p88
      %p91 = scmp.ne.s32.totalorder %s74, %s90
      %p92 = scmp.eq.s32.totalorder %s24, 0
      %p93 = por %p91, %p92
      %s94 = ssub.s32 %s25, %s37
      %p95 = scmp.eq.s32.totalorder %s94, 0
      %s97 = sadd.s32 %s96, 1
      %s98 = scalar_select %p95, %s96, %s97
      %p101 = pneg %p95
      %p102 = scmp.eq.s32.totalorder %s18, 3
      %p103 = por %p101, %p102
      %p104 = scmp.ne.s32.totalorder %s96, %s99
      %p105 = scmp.eq.s32.totalorder %s18, 0
      %p106 = por %p104, %p105
      %p107 = scmp.ne.s32.totalorder %s96, %s99
      %p108 = scmp.eq.s32.totalorder %s23, 3
      %p109 = por %p107, %p108
      %p110 = scmp.ne.s32.totalorder %s99, %s100
      %p111 = scmp.eq.s32.totalorder %s23, 0
      %p112 = por %p110, %p111
      %p113 = scmp.ne.s32.totalorder %s99, %s100
      %p114 = scmp.eq.s32.totalorder %s24, 3
      %p115 = por %p113, %p114
      %p117 = scmp.ne.s32.totalorder %s100, %s116
      %p118 = scmp.eq.s32.totalorder %s24, 0
      %p119 = por %p117, %p118
      %s120 = ssub.s32 %s26, %s33
      %s121 = ssub.s32 %s25, %s37
      %s122 = sor.u32 %s120, %s121
      %p123 = scmp.eq.s32.totalorder %s122, 0
      %s125 = sadd.s32 %s124, 1
      %s126 = scalar_select %p123, %s124, %s125
      %p129 = pneg %p123
      %p130 = scmp.eq.s32.totalorder %s18, 3
      %p131 = por %p129, %p130
      %p132 = scmp.ne.s32.totalorder %s124, %s127
      %p133 = scmp.eq.s32.totalorder %s18, 0
      %p134 = por %p132, %p133
      %p135 = scmp.ne.s32.totalorder %s124, %s127
      %p136 = scmp.eq.s32.totalorder %s23, 3
      %p137 = por %p135, %p136
      %p138 = scmp.ne.s32.totalorder %s127, %s128
      %p139 = scmp.eq.s32.totalorder %s23, 0
      %p140 = por %p138, %p139
      %p141 = scmp.ne.s32.totalorder %s127, %s128
      %p142 = scmp.eq.s32.totalorder %s24, 3
      %p143 = por %p141, %p142
      %p145 = scmp.ne.s32.totalorder %s128, %s144
      %p146 = scmp.eq.s32.totalorder %s24, 0
      %p147 = por %p145, %p146
      %p148 = scmp.le.s32.totalorder 1, %s18
      %p149 = scmp.lt.s32.totalorder %s18, 5
      %p150 = pnand %p148, %p149
      %p151 = pneg %p150
      // Predicated region
      $region9: #{tpu_custom_call.1} parent=5 // pred_check
        _
      $region10: #{tpu_custom_call.1} parent=5 // pred_check_branch
        %153 = sbr.rel (%p150) target = $region12
      $region11: #{tpu_custom_call.1} parent=5 // pred_region
        %s154 = ssub.s32 %s18, 1
      $region12: #{tpu_custom_call.1} parent=5 // pred_fallthru
        _
      %p155 = scmp.lt.s32.totalorder %s18, 4
      // Predicated region
      $region13: #{tpu_custom_call.1} parent=5 // pred_check
        %p156 = pneg %p155
      $region14: #{tpu_custom_call.1} parent=5 // pred_check_branch
        %158 = sbr.rel (%p156) target = $region16
      $region15: #{tpu_custom_call.1} parent=5 // pred_region
        // Predicated region
        $region17: #{tpu_custom_call.1} parent=15 // pred_check
          %p159 = pneg %p52
        $region18: #{tpu_custom_call.1} parent=15 // pred_check_branch
          %161 = sbr.rel (%p159) target = $region20
        $region19: #{tpu_custom_call.1} parent=15 // pred_region
          %s162 = sand.u32 %s42, 1
          %s163 = scalar_lea.sflag [#allocation3], %s162
          %s164 = sand.u32 %s42, 1
          %s165 = smul.addr %s164, 8
          %s166 = scalar_lea.vmem [#allocation2], %s165
          %s168 = ssub.s32 128, 128
          %169 = vsyncadd %s163, %s168
          %s170 = smul.addr %s26, 2
          %s171 = sadd.s32 %s25, %s170
          %s172 = smul.addr %s171, 128
          %s173 = scalar_lea.hbm %s0, %s172
          %s175 = sshll.u32 %s166, 4
          %s176 = int_to_ptr.vmem [resolvable:$true] %s175
          %178 = dma.hbm_to_vmem [thread:$0]  %s173, 128, %s176, %s163
        $region20: #{tpu_custom_call.1} parent=15 // pred_fallthru
          _
        // Predicated region
        $region21: #{tpu_custom_call.1} parent=15 // pred_check
          %p179 = pneg %p80
        $region22: #{tpu_custom_call.1} parent=15 // pred_check_branch
          %181 = sbr.rel (%p179) target = $region24
        $region23: #{tpu_custom_call.1} parent=15 // pred_region
          %s182 = sand.u32 %s70, 1
          %s183 = scalar_lea.sflag [#allocation6], %s182
          %s184 = sand.u32 %s70, 1
          %s185 = smul.addr %s184, 8
          %s186 = scalar_lea.vmem [#allocation5], %s185
          %s188 = ssub.s32 128, 128
          %189 = vsyncadd %s183, %s188
          %s190 = smul.addr %s26, 2
          %s191 = sadd.s32 %s25, %s190
          %s192 = smul.addr %s191, 128
          %s193 = scalar_lea.hbm %s1, %s192
          %s195 = sshll.u32 %s186, 4
          %s196 = int_to_ptr.vmem [resolvable:$true] %s195
          %198 = dma.hbm_to_vmem [thread:$0]  %s193, 128, %s196, %s183
        $region24: #{tpu_custom_call.1} parent=15 // pred_fallthru
          _
        // Predicated region
        $region25: #{tpu_custom_call.1} parent=15 // pred_check
          %p199 = pneg %p106
        $region26: #{tpu_custom_call.1} parent=15 // pred_check_branch
          %201 = sbr.rel (%p199) target = $region28
        $region27: #{tpu_custom_call.1} parent=15 // pred_region
          %p202 = scmp.lt.s32.totalorder %s25, 1
          %s203 = scalar_select %p202, %s25, 1
          %s204 = scalar_lea.vmem %s2, %s203
        $region28: #{tpu_custom_call.1} parent=15 // pred_fallthru
          _
      $region16: #{tpu_custom_call.1} parent=5 // pred_fallthru
        _
      %p205 = scmp.le.s32.totalorder 1, %s18
      %p206 = scmp.lt.s32.totalorder %s18, 5
      %p207 = pnand %p205, %p206
      %p208 = pneg %p207
      // Predicated region
      $region29: #{tpu_custom_call.1} parent=5 // pred_check
        _
      $region30: #{tpu_custom_call.1} parent=5 // pred_check_branch
        %210 = sbr.rel (%p207) target = $region32
      $region31: #{tpu_custom_call.1} parent=5 // pred_region
        %s211 = ssub.s32 %s18, 1
        %s212 = sand.u32 %s45, 1
        %s213 = scalar_lea.sflag [#allocation3], %s212
        %s214 = sand.u32 %s45, 1
        %s215 = smul.addr %s214, 8
        %s216 = scalar_lea.vmem [#allocation2], %s215
        // Predicated region
        $region33: #{tpu_custom_call.1} parent=31 // pred_check
          %p217 = pneg %p58
        $region34: #{tpu_custom_call.1} parent=31 // pred_check_branch
          %219 = sbr.rel (%p217) target = $region36
        $region35: #{tpu_custom_call.1} parent=31 // pred_region
          %220 = dma.done %s213, 128
        $region36: #{tpu_custom_call.1} parent=31 // pred_fallthru
          _
        %s221 = sand.u32 %s73, 1
        %s222 = scalar_lea.sflag [#allocation6], %s221
        %s223 = sand.u32 %s73, 1
        %s224 = smul.addr %s223, 8
        %s225 = scalar_lea.vmem [#allocation5], %s224
        // Predicated region
        $region37: #{tpu_custom_call.1} parent=31 // pred_check
          %p226 = pneg %p86
        $region38: #{tpu_custom_call.1} parent=31 // pred_check_branch
          %228 = sbr.rel (%p226) target = $region40
        $region39: #{tpu_custom_call.1} parent=31 // pred_region
          %229 = dma.done %s222, 128
        $region40: #{tpu_custom_call.1} parent=31 // pred_fallthru
          _
        %s230 = sand.u32 %s45, 1
        %s231 = scalar_lea.sflag [#allocation3], %s230
        %s232 = sand.u32 %s45, 1
        %s233 = smul.addr %s232, 8
        %s234 = scalar_lea.vmem [#allocation2], %s233
        %p235 = pneg %p58
        %p236 = pneg %p55
        %s237 = sand.u32 %s73, 1
        %s238 = scalar_lea.sflag [#allocation6], %s237
        %s239 = sand.u32 %s73, 1
        %s240 = smul.addr %s239, 8
        %s241 = scalar_lea.vmem [#allocation5], %s240
        %p242 = pneg %p86
        %p243 = pneg %p83
        %p244 = scmp.lt.s32.totalorder %s27, 1
        %s245 = scalar_select %p244, %s27, 1
        %s246 = scalar_lea.vmem %s2, %s245
        %p247 = pneg %p112
        %p248 = pneg %p109
        %p249 = pneg %p140
        %p250 = pneg %p137
        %s251 = sand.u32 %s127, 1
        %s252 = scalar_lea.sflag [#allocation4], %s251
        %s253 = sand.u32 %s127, 1
        %s254 = smul.addr %s253, 8
        %s255 = scalar_lea.vmem [#allocation7], %s254
        %p256 = scmp.lt.s32.totalorder %s27, 1
        %s257 = scalar_select %p256, %s27, 1
        %s258 = scalar_lea.vmem %s2, %s257
        %v259 = vld [vmem:[%s216] sm:$0xff]
        %v260 = vld [vmem:[%s225] sm:$0xff]
        %v261 = vld [vmem:[%s258] sm:$0x1]
        %v262 = vxor.u32 %v259, 2147483648
        %v263 = vmul.f32 %v262, 1.442695
        %v264 = vpow.pop %v263
        %v265 = vadd.f32 %v264, 1.0
        %v266 = vrcp.pop %v265
        %v267 = vmul.f32 1.0, %v266
        %v268 = vsub.f32 1.0, %v267
        %v269 = vmax.f32 %v267, 1e-08
        %v270 = vlog2.pop %v269
        %v271 = vmul.f32 %v270, 0.6931472
        %v272 = vmax.f32 %v268, 1e-08
        %v273 = vlog2.pop %v272
        %v274 = vmul.f32 %v273, 0.6931472
        %v275 = vmul.f32 %v268, %v268
        %v276 = vmul.f32 %v267, %v267
        %v277 = vsub.f32 0.0, %v261
        %v279 = vlaneseq
        %v280 = vshrl.u32 %v279, 7
        %v281 = vsub.s32 0, %v280
        %v282 = vrot.slane %v277, %v281
        %v284 = vmul.f32 %v282, %v275
        %v285 = vmul.f32 %v284, %v260
        %v286 = vmul.f32 %v285, %v271
        %v287 = vsub.f32 1.0, %v260
        %v288 = vmul.f32 %v276, %v287
        %v289 = vmul.f32 %v288, %v274
        %v290 = vsub.f32 %v286, %v289
        %291 = vst [vmem:[%s255] sm:$0xff] %v290
        %s292 = sand.u32 %s127, 1
        %s293 = scalar_lea.sflag [#allocation4], %s292
        %s294 = sand.u32 %s127, 1
        %s295 = smul.addr %s294, 8
        %s296 = scalar_lea.vmem [#allocation7], %s295
        // Predicated region
        $region41: #{tpu_custom_call.1} parent=31 // pred_check
          %p297 = pneg %p137
        $region42: #{tpu_custom_call.1} parent=31 // pred_check_branch
          %299 = sbr.rel (%p297) target = $region44
        $region43: #{tpu_custom_call.1} parent=31 // pred_region
          %s301 = ssub.s32 128, 128
          %302 = vsyncadd %s293, %s301
          %s303 = smul.addr %s28, 2
          %s304 = sadd.s32 %s27, %s303
          %s305 = smul.addr %s304, 128
          %s306 = scalar_lea.hbm %s3, %s305
          %s308 = sshll.u32 %s296, 4
          %s309 = int_to_ptr.vmem [resolvable:$true] %s308
          %311 = dma.vmem_to_hbm [thread:$0]  %s309, 128, %s306, %s293
        $region44: #{tpu_custom_call.1} parent=31 // pred_fallthru
          _
      $region32: #{tpu_custom_call.1} parent=5 // pred_fallthru
        _
      %p312 = scmp.le.s32.totalorder 2, %s18
      // Predicated region
      $region45: #{tpu_custom_call.1} parent=5 // pred_check
        %p313 = pneg %p312
      $region46: #{tpu_custom_call.1} parent=5 // pred_check_branch
        %315 = sbr.rel (%p313) target = $region48
      $region47: #{tpu_custom_call.1} parent=5 // pred_region
        %s316 = ssub.s32 %s18, 2
        // Predicated region
        $region49: #{tpu_custom_call.1} parent=47 // pred_check
          %p317 = pneg %p143
        $region50: #{tpu_custom_call.1} parent=47 // pred_check_branch
          %319 = sbr.rel (%p317) target = $region52
        $region51: #{tpu_custom_call.1} parent=47 // pred_region
          %s320 = sand.u32 %s128, 1
          %s321 = scalar_lea.sflag [#allocation4], %s320
          %s322 = sand.u32 %s128, 1
          %s323 = smul.addr %s322, 8
          %s324 = scalar_lea.vmem [#allocation7], %s323
          %325 = dma.done %s321, 128
        $region52: #{tpu_custom_call.1} parent=47 // pred_fallthru
          _
      $region48: #{tpu_custom_call.1} parent=5 // pred_fallthru
        _
    $region6: #{tpu_custom_call.1} parent=1 // loop_footer
      %s22 = sadd.s32 1, %s18
    $region7: #{tpu_custom_call.1} parent=1 // loop_footer_branch
      %17 = sbr.rel target = $region3
    $region8: #{tpu_custom_call.1} parent=1 // loop_exit
      _
    %326 = vsyncpa [#allocation3], 1
    %s327 = scalar_lea.sflag [#allocation3], 1
    %328 = vsyncpa %s327, 1
    %329 = vsyncpa [#allocation6], 1
    %s330 = scalar_lea.sflag [#allocation6], 1
    %331 = vsyncpa %s330, 1
    %332 = vsyncpa [#allocation4], 1
    %s333 = scalar_lea.sflag [#allocation4], 1
    %334 = vsyncpa %s333, 1

</llo_original>
